<compile_context>
chip_gen: v7x
topology: tpu7x:2x2x1
jax: 0.10.0
libtpu: 0.0.40
codegen_flags: <defaults>
</compile_context>

<pallas_src>
import jax
import jax.numpy as jnp
from jax import lax
from jax.experimental import pallas as pl
from jax.experimental.pallas import tpu as pltpu


def clustering_kernel(idx1_ref, idx2_ref, e1_ref, e2_ref, c_ref, out_ref):
    # idx*_ref : SMEM int32 (M,)
    # e1_ref   : VMEM f32 (N1, D), e2_ref : VMEM f32 (N2, D), c_ref : VMEM f32 (K, D)
    # out_ref  : SMEM f32 (3,) -> [L_IDA, L_cluster, L_overlap]
    e1 = e1_ref[...]
    e2 = e2_ref[...]
    c = c_ref[...]
    n1, d = e1.shape
    n2 = e2.shape[0]
    k = c.shape[0]
    m = idx1_ref.shape[0]
    total = n1 + n2 + k

    # ---------------- single fused pairwise-distance block ----------------
    # Stack [e1; e2; c] -> one MXU push against c.T; pad rows to a multiple of
    # 8 (static, trace-time) so the sublane layout stays tiled.
    pad = (-total) % 8
    parts = [e1, e2, c]
    if pad:
        parts.append(jnp.zeros((pad, d), jnp.float32))
    allrows = jnp.concatenate(parts, axis=0)                          # (total+pad, D)

    allnorm = jnp.sum(allrows * allrows, axis=1, keepdims=True)       # (total+pad, 1)
    c_sq = allnorm[n1 + n2:total]                                     # (K, 1) shared norms
    dots = jnp.dot(allrows, c.T, preferred_element_type=jnp.float32)  # one MXU push

    sq_all = jnp.maximum(allnorm[:total] + c_sq.T - 2.0 * dots[:total], 0.0)
    sq_users = sq_all[:n1 + n2]                                       # (N1+N2, K)
    sqc = sq_all[n1 + n2:]                                            # (K, K)

    d_users = jnp.sqrt(sq_users)                                      # one EUP pass

    # ---------------- L_IDA ----------------
    colsum1 = jnp.sum(d_users[:n1], axis=0, keepdims=True)            # (1, K)
    colsum2 = jnp.sum(d_users[n1:], axis=0, keepdims=True)            # (1, K)

    min1 = jnp.min(colsum1, keepdims=True)                            # (1, 1)
    max1 = jnp.max(colsum1, keepdims=True)
    min2 = jnp.min(colsum2, keepdims=True)
    max2 = jnp.max(colsum2, keepdims=True)
    inv1 = pl.reciprocal(max1 - min1 + 1e-5, approx=True)             # EUP vrcp
    inv2 = pl.reciprocal(max2 - min2 + 1e-5, approx=True)
    p_j = (colsum1 - min1) * inv1
    q_j = (colsum2 - min2) * inv2
    l_ida = jnp.sqrt(jnp.sum((p_j - q_j) ** 2))

    # ---------------- L_cluster ----------------
    row = lax.broadcasted_iota(jnp.int32, (k, k), 0)
    col = lax.broadcasted_iota(jnp.int32, (k, k), 1)
    # Keep the diagonal mask: after the max(.,0) clamp the diagonal is a tiny
    # non-negative rounding residue, not exactly 0.
    offdiag = jnp.where(row == col, 0.0, sqc)
    term1 = jnp.sum(offdiag) * (1.0 / (k * (k - 1)))                  # constant folded

    minsq_sum = jnp.sum(jnp.min(sq_users, axis=1, keepdims=True))
    term2 = minsq_sum * (1.0 / (n1 + n2))                             # constant folded
    l_cluster = term1 + term2 * (1.0 / k)

    # ---------------- L_overlap ----------------
    # Stack the M SMEM-indexed rows into (M, D) values (static unroll, M tiny),
    # then one lane-reduce + one batched sqrt + one sum.
    if m > 0:
        rows1 = [e1_ref[pl.ds(idx1_ref[i], 1), :] for i in range(m)]
        rows2 = [e2_ref[pl.ds(idx2_ref[i], 1), :] for i in range(m)]
        a = jnp.concatenate(rows1, axis=0)                            # (M, D)
        b = jnp.concatenate(rows2, axis=0)                            # (M, D)
        diff = a - b
        ov = jnp.sqrt(jnp.sum(diff * diff, axis=1, keepdims=True))    # (M, 1)
        l_overlap = jnp.sum(ov) * (1.0 / m)                           # constant folded
    else:
        # torch.mean over an empty tensor -> NaN (parity).
        l_overlap = jnp.float32(jnp.nan)

    out_ref[0] = l_ida
    out_ref[1] = l_cluster
    out_ref[2] = l_overlap


@jax.jit
def clustering_forward(user_emb1, user_emb2, cluster_centers,
                       overlap_idx1, overlap_idx2):
    n1, d = user_emb1.shape
    n2, _ = user_emb2.shape
    k, _ = cluster_centers.shape

    out = pl.pallas_call(
        clustering_kernel,
        out_shape=jax.ShapeDtypeStruct((3,), jnp.float32),
        in_specs=[
            pl.BlockSpec(memory_space=pltpu.MemorySpace.SMEM),        # overlap_idx1
            pl.BlockSpec(memory_space=pltpu.MemorySpace.SMEM),        # overlap_idx2
            # Full-array VMEM blocks: (16,32)/(8,32) are legal only because they
            # equal the full array dims; any future partial blocking must obey
            # the (8,128) rule.
            pl.BlockSpec((n1, d), lambda: (0, 0)),                    # user_emb1
            pl.BlockSpec((n2, d), lambda: (0, 0)),                    # user_emb2
            pl.BlockSpec((k, d), lambda: (0, 0)),                     # cluster_centers
        ],
        out_specs=pl.BlockSpec(memory_space=pltpu.MemorySpace.SMEM),
    )(overlap_idx1, overlap_idx2, user_emb1, user_emb2, cluster_centers)

    return out[0], out[1], out[2]


def reference_forward(e1, e2, c, idx1, idx2):
    """Pure-JAX reference matching the PyTorch module (direct cdist)."""
    d1 = jnp.sqrt(jnp.sum((e1[:, None, :] - c[None, :, :]) ** 2, axis=-1))
    d2 = jnp.sqrt(jnp.sum((e2[:, None, :] - c[None, :, :]) ** 2, axis=-1))
    cs1 = d1.sum(0)
    cs2 = d2.sum(0)
    p = (cs1 - cs1.min()) / (cs1.max() - cs1.min() + 1e-5)
    q = (cs2 - cs2.min()) / (cs2.max() - cs2.min() + 1e-5)
    l_ida = jnp.sqrt(jnp.sum((p - q) ** 2))

    k = c.shape[0]
    dc = jnp.sum((c[:, None, :] - c[None, :, :]) ** 2, axis=-1)
    mask = 1.0 - jnp.eye(k, dtype=jnp.float32)
    term1 = jnp.sum(dc * mask) / (k * (k - 1))
    ue = jnp.concatenate([e1, e2], axis=0)
    dsq = jnp.sum((ue[:, None, :] - c[None, :, :]) ** 2, axis=-1)
    term2 = jnp.min(dsq, axis=1).sum() / ue.shape[0]
    l_cluster = term1 + term2 / k

    l_overlap = jnp.mean(jnp.sqrt(jnp.sum((e1[idx1] - e2[idx2]) ** 2, axis=1)))
    return l_ida, l_cluster, l_overlap


if __name__ == "__main__":
    import numpy as np

    # Small deterministic shapes: N1 = N2 = 16 users, K = 8 clusters,
    # embedding_dim = 32, 4 overlapping users.
    N1, N2, K, D, M = 16, 16, 8, 32, 4

    key = jax.random.PRNGKey(0)
    k1, k2, k3 = jax.random.split(key, 3)
    user_emb1 = jax.random.normal(k1, (N1, D), dtype=jnp.float32)
    user_emb2 = jax.random.normal(k2, (N2, D), dtype=jnp.float32)
    cluster_centers = jax.random.normal(k3, (K, D), dtype=jnp.float32)
    overlap_idx1 = jnp.array([0, 3, 5, 7], dtype=jnp.int32)
    overlap_idx2 = jnp.array([1, 2, 4, 6], dtype=jnp.int32)

    l_ida, l_cluster, l_overlap = clustering_forward(
        user_emb1, user_emb2, cluster_centers, overlap_idx1, overlap_idx2)
    jax.block_until_ready((l_ida, l_cluster, l_overlap))

    r_ida, r_cluster, r_overlap = reference_forward(
        user_emb1, user_emb2, cluster_centers, overlap_idx1, overlap_idx2)

    # approx reciprocal (~2^-12 rel err) -> keep tolerances a touch looser than 1e-3.
    np.testing.assert_allclose(np.asarray(l_ida), np.asarray(r_ida), rtol=5e-3, atol=5e-3)
    np.testing.assert_allclose(np.asarray(l_cluster), np.asarray(r_cluster), rtol=5e-3, atol=5e-3)
    np.testing.assert_allclose(np.asarray(l_overlap), np.asarray(r_overlap), rtol=5e-3, atol=5e-3)

    print("KERNEL_OK")
</pallas_src>

<mosaic_0001>
module attributes {stable_mosaic.version = 11 : i64} {
  func.func @clustering_kernel(%arg0: memref<4xi32, #tpu.memory_space<smem>>, %arg1: memref<4xi32, #tpu.memory_space<smem>>, %arg2: memref<16x32xf32, #tpu.memory_space<vmem>>, %arg3: memref<16x32xf32, #tpu.memory_space<vmem>>, %arg4: memref<8x32xf32, #tpu.memory_space<vmem>>, %arg5: memref<3xf32, #tpu.memory_space<smem>>) attributes {dimension_semantics = [], scalar_prefetch = 0 : i64, scratch_operands = 0 : i64, tpu.core_type = #tpu.core_type<tc>} {
    %c0 = arith.constant 0 : index
    %c0_0 = arith.constant 0 : index
    %0 = vector.load %arg2[%c0, %c0_0] : memref<16x32xf32, #tpu.memory_space<vmem>>, vector<16x32xf32>
    %c0_1 = arith.constant 0 : index
    %c0_2 = arith.constant 0 : index
    %1 = vector.load %arg3[%c0_1, %c0_2] : memref<16x32xf32, #tpu.memory_space<vmem>>, vector<16x32xf32>
    %c0_3 = arith.constant 0 : index
    %c0_4 = arith.constant 0 : index
    %2 = vector.load %arg4[%c0_3, %c0_4] : memref<8x32xf32, #tpu.memory_space<vmem>>, vector<8x32xf32>
    %3 = tpu.concatenate %0, %1, %2 in 0 : vector<16x32xf32>, vector<16x32xf32>, vector<8x32xf32> -> vector<40x32xf32>
    %4 = arith.mulf %3, %3 : vector<40x32xf32>
    %cst = arith.constant dense<0.000000e+00> : vector<40xf32>
    %5 = vector.multi_reduction <add>, %4, %cst [1] : vector<40x32xf32> to vector<40xf32>
    %6 = vector.shape_cast %5 : vector<40xf32> to vector<40x1xf32>
    %7 = vector.extract_strided_slice %6 {offsets = [32, 0], sizes = [8, 1], strides = [1, 1]} : vector<40x1xf32> to vector<8x1xf32>
    %8 = tpu.transpose %2, [1, 0] : vector<8x32xf32> -> vector<32x8xf32>
    %cst_5 = arith.constant dense<0.000000e+00> : vector<40x8xf32>
    %9 = tpu.matmul %3, %8, %cst_5 {dimension_numbers = #tpu.dot_dimension_numbers<[1], [0], [0], [1], [0, 0, 1, 1], [], []>} : vector<40x32xf32>, vector<32x8xf32>, vector<40x8xf32> -> vector<40x8xf32>
    %10 = tpu.transpose %7, [1, 0] : vector<8x1xf32> -> vector<1x8xf32>
    %11 = vector.broadcast %6 : vector<40x1xf32> to vector<40x8xf32>
    %12 = vector.broadcast %10 : vector<1x8xf32> to vector<40x8xf32>
    %13 = arith.addf %11, %12 : vector<40x8xf32>
    %cst_6 = arith.constant 2.000000e+00 : f32
    %14 = vector.broadcast %cst_6 : f32 to vector<40x8xf32>
    %15 = arith.mulf %14, %9 : vector<40x8xf32>
    %16 = arith.subf %13, %15 : vector<40x8xf32>
    %cst_7 = arith.constant 0.000000e+00 : f32
    %17 = vector.broadcast %cst_7 : f32 to vector<40x8xf32>
    %18 = arith.maximumf %16, %17 : vector<40x8xf32>
    %19 = vector.extract_strided_slice %18 {offsets = [0, 0], sizes = [32, 8], strides = [1, 1]} : vector<40x8xf32> to vector<32x8xf32>
    %20 = vector.extract_strided_slice %18 {offsets = [32, 0], sizes = [8, 8], strides = [1, 1]} : vector<40x8xf32> to vector<8x8xf32>
    %21 = math.sqrt %19 : vector<32x8xf32>
    %22 = vector.extract_strided_slice %21 {offsets = [0, 0], sizes = [16, 8], strides = [1, 1]} : vector<32x8xf32> to vector<16x8xf32>
    %cst_8 = arith.constant dense<0.000000e+00> : vector<8xf32>
    %23 = vector.multi_reduction <add>, %22, %cst_8 [0] : vector<16x8xf32> to vector<8xf32>
    %24 = vector.shape_cast %23 : vector<8xf32> to vector<1x8xf32>
    %25 = vector.extract_strided_slice %21 {offsets = [16, 0], sizes = [16, 8], strides = [1, 1]} : vector<32x8xf32> to vector<16x8xf32>
    %cst_9 = arith.constant dense<0.000000e+00> : vector<8xf32>
    %26 = vector.multi_reduction <add>, %25, %cst_9 [0] : vector<16x8xf32> to vector<8xf32>
    %27 = vector.shape_cast %26 : vector<8xf32> to vector<1x8xf32>
    %28 = vector.shape_cast %24 : vector<1x8xf32> to vector<1x1x8xf32>
    %cst_10 = arith.constant dense<0x7F800000> : vector<1xf32>
    %29 = vector.multi_reduction <minimumf>, %28, %cst_10 [1, 2] : vector<1x1x8xf32> to vector<1xf32>
    %30 = vector.shape_cast %29 : vector<1xf32> to vector<1x1x1xf32>
    %31 = vector.extract %30[0, 0, 0] : f32 from vector<1x1x1xf32>
    %32 = vector.broadcast %31 : f32 to vector<1x1xf32>
    %33 = vector.shape_cast %24 : vector<1x8xf32> to vector<1x1x8xf32>
    %cst_11 = arith.constant dense<0xFF800000> : vector<1xf32>
    %34 = vector.multi_reduction <maximumf>, %33, %cst_11 [1, 2] : vector<1x1x8xf32> to vector<1xf32>
    %35 = vector.shape_cast %34 : vector<1xf32> to vector<1x1x1xf32>
    %36 = vector.extract %35[0, 0, 0] : f32 from vector<1x1x1xf32>
    %37 = vector.broadcast %36 : f32 to vector<1x1xf32>
    %38 = vector.shape_cast %27 : vector<1x8xf32> to vector<1x1x8xf32>
    %cst_12 = arith.constant dense<0x7F800000> : vector<1xf32>
    %39 = vector.multi_reduction <minimumf>, %38, %cst_12 [1, 2] : vector<1x1x8xf32> to vector<1xf32>
    %40 = vector.shape_cast %39 : vector<1xf32> to vector<1x1x1xf32>
    %41 = vector.extract %40[0, 0, 0] : f32 from vector<1x1x1xf32>
    %42 = vector.broadcast %41 : f32 to vector<1x1xf32>
    %43 = vector.shape_cast %27 : vector<1x8xf32> to vector<1x1x8xf32>
    %cst_13 = arith.constant dense<0xFF800000> : vector<1xf32>
    %44 = vector.multi_reduction <maximumf>, %43, %cst_13 [1, 2] : vector<1x1x8xf32> to vector<1xf32>
    %45 = vector.shape_cast %44 : vector<1xf32> to vector<1x1x1xf32>
    %46 = vector.extract %45[0, 0, 0] : f32 from vector<1x1x1xf32>
    %47 = vector.broadcast %46 : f32 to vector<1x1xf32>
    %48 = arith.subf %37, %32 : vector<1x1xf32>
    %cst_14 = arith.constant 9.99999974E-6 : f32
    %49 = vector.broadcast %cst_14 : f32 to vector<1x1xf32>
    %50 = arith.addf %48, %49 : vector<1x1xf32>
    %51 = tpu.reciprocal %50 {approx = true} : vector<1x1xf32> -> vector<1x1xf32>
    %52 = arith.subf %47, %42 : vector<1x1xf32>
    %cst_15 = arith.constant 9.99999974E-6 : f32
    %53 = vector.broadcast %cst_15 : f32 to vector<1x1xf32>
    %54 = arith.addf %52, %53 : vector<1x1xf32>
    %55 = tpu.reciprocal %54 {approx = true} : vector<1x1xf32> -> vector<1x1xf32>
    %56 = vector.broadcast %32 : vector<1x1xf32> to vector<1x8xf32>
    %57 = arith.subf %24, %56 : vector<1x8xf32>
    %58 = vector.broadcast %51 : vector<1x1xf32> to vector<1x8xf32>
    %59 = arith.mulf %57, %58 : vector<1x8xf32>
    %60 = vector.broadcast %42 : vector<1x1xf32> to vector<1x8xf32>
    %61 = arith.subf %27, %60 : vector<1x8xf32>
    %62 = vector.broadcast %55 : vector<1x1xf32> to vector<1x8xf32>
    %63 = arith.mulf %61, %62 : vector<1x8xf32>
    %64 = arith.subf %59, %63 : vector<1x8xf32>
    %65 = arith.mulf %64, %64 : vector<1x8xf32>
    %66 = vector.shape_cast %65 : vector<1x8xf32> to vector<1x1x8xf32>
    %cst_16 = arith.constant dense<0.000000e+00> : vector<1xf32>
    %67 = vector.multi_reduction <add>, %66, %cst_16 [1, 2] : vector<1x1x8xf32> to vector<1xf32>
    %68 = vector.shape_cast %67 : vector<1xf32> to vector<1x1x1xf32>
    %69 = vector.extract %68[0, 0, 0] : f32 from vector<1x1x1xf32>
    %70 = math.sqrt %69 : f32
    %71 = tpu.iota {dimensions = array<i32: 0>} : vector<8x8xi32>
    %72 = tpu.iota {dimensions = array<i32: 1>} : vector<8x8xi32>
    %73 = arith.cmpi eq, %71, %72 : vector<8x8xi32>
    %cst_17 = arith.constant 0.000000e+00 : f32
    %74 = vector.broadcast %cst_17 : f32 to vector<8x8xf32>
    %75 = arith.select %73, %74, %20 : vector<8x8xi1>, vector<8x8xf32>
    %76 = vector.shape_cast %75 : vector<8x8xf32> to vector<1x8x8xf32>
    %cst_18 = arith.constant dense<0.000000e+00> : vector<1xf32>
    %77 = vector.multi_reduction <add>, %76, %cst_18 [1, 2] : vector<1x8x8xf32> to vector<1xf32>
    %78 = vector.shape_cast %77 : vector<1xf32> to vector<1x1x1xf32>
    %79 = vector.extract %78[0, 0, 0] : f32 from vector<1x1x1xf32>
    %cst_19 = arith.constant 0.0178571437 : f32
    %80 = arith.mulf %79, %cst_19 : f32
    %cst_20 = arith.constant dense<0x7F800000> : vector<32xf32>
    %81 = vector.multi_reduction <minimumf>, %19, %cst_20 [1] : vector<32x8xf32> to vector<32xf32>
    %82 = vector.shape_cast %81 : vector<32xf32> to vector<32x1xf32>
    %83 = vector.shape_cast %82 : vector<32x1xf32> to vector<1x32x1xf32>
    %cst_21 = arith.constant dense<0.000000e+00> : vector<1xf32>
    %84 = vector.multi_reduction <add>, %83, %cst_21 [1, 2] : vector<1x32x1xf32> to vector<1xf32>
    %85 = vector.shape_cast %84 : vector<1xf32> to vector<1x1x1xf32>
    %86 = vector.extract %85[0, 0, 0] : f32 from vector<1x1x1xf32>
    %cst_22 = arith.constant 3.125000e-02 : f32
    %87 = arith.mulf %86, %cst_22 : f32
    %cst_23 = arith.constant 1.250000e-01 : f32
    %88 = arith.mulf %87, %cst_23 : f32
    %89 = arith.addf %80, %88 : f32
    %c0_24 = arith.constant 0 : index
    %90 = memref.load %arg0[%c0_24] : memref<4xi32, #tpu.memory_space<smem>>
    %91 = arith.index_cast %90 : i32 to index
    %c0_25 = arith.constant 0 : index
    %92 = vector.load %arg2[%91, %c0_25] : memref<16x32xf32, #tpu.memory_space<vmem>>, vector<1x32xf32>
    %c1 = arith.constant 1 : index
    %93 = memref.load %arg0[%c1] : memref<4xi32, #tpu.memory_space<smem>>
    %94 = arith.index_cast %93 : i32 to index
    %c0_26 = arith.constant 0 : index
    %95 = vector.load %arg2[%94, %c0_26] : memref<16x32xf32, #tpu.memory_space<vmem>>, vector<1x32xf32>
    %c2 = arith.constant 2 : index
    %96 = memref.load %arg0[%c2] : memref<4xi32, #tpu.memory_space<smem>>
    %97 = arith.index_cast %96 : i32 to index
    %c0_27 = arith.constant 0 : index
    %98 = vector.load %arg2[%97, %c0_27] : memref<16x32xf32, #tpu.memory_space<vmem>>, vector<1x32xf32>
    %c3 = arith.constant 3 : index
    %99 = memref.load %arg0[%c3] : memref<4xi32, #tpu.memory_space<smem>>
    %100 = arith.index_cast %99 : i32 to index
    %c0_28 = arith.constant 0 : index
    %101 = vector.load %arg2[%100, %c0_28] : memref<16x32xf32, #tpu.memory_space<vmem>>, vector<1x32xf32>
    %c0_29 = arith.constant 0 : index
    %102 = memref.load %arg1[%c0_29] : memref<4xi32, #tpu.memory_space<smem>>
    %103 = arith.index_cast %102 : i32 to index
    %c0_30 = arith.constant 0 : index
    %104 = vector.load %arg3[%103, %c0_30] : memref<16x32xf32, #tpu.memory_space<vmem>>, vector<1x32xf32>
    %c1_31 = arith.constant 1 : index
    %105 = memref.load %arg1[%c1_31] : memref<4xi32, #tpu.memory_space<smem>>
    %106 = arith.index_cast %105 : i32 to index
    %c0_32 = arith.constant 0 : index
    %107 = vector.load %arg3[%106, %c0_32] : memref<16x32xf32, #tpu.memory_space<vmem>>, vector<1x32xf32>
    %c2_33 = arith.constant 2 : index
    %108 = memref.load %arg1[%c2_33] : memref<4xi32, #tpu.memory_space<smem>>
    %109 = arith.index_cast %108 : i32 to index
    %c0_34 = arith.constant 0 : index
    %110 = vector.load %arg3[%109, %c0_34] : memref<16x32xf32, #tpu.memory_space<vmem>>, vector<1x32xf32>
    %c3_35 = arith.constant 3 : index
    %111 = memref.load %arg1[%c3_35] : memref<4xi32, #tpu.memory_space<smem>>
    %112 = arith.index_cast %111 : i32 to index
    %c0_36 = arith.constant 0 : index
    %113 = vector.load %arg3[%112, %c0_36] : memref<16x32xf32, #tpu.memory_space<vmem>>, vector<1x32xf32>
    %114 = tpu.concatenate %92, %95, %98, %101 in 0 : vector<1x32xf32>, vector<1x32xf32>, vector<1x32xf32>, vector<1x32xf32> -> vector<4x32xf32>
    %115 = tpu.concatenate %104, %107, %110, %113 in 0 : vector<1x32xf32>, vector<1x32xf32>, vector<1x32xf32>, vector<1x32xf32> -> vector<4x32xf32>
    %116 = arith.subf %114, %115 : vector<4x32xf32>
    %117 = arith.mulf %116, %116 : vector<4x32xf32>
    %cst_37 = arith.constant dense<0.000000e+00> : vector<4xf32>
    %118 = vector.multi_reduction <add>, %117, %cst_37 [1] : vector<4x32xf32> to vector<4xf32>
    %119 = vector.shape_cast %118 : vector<4xf32> to vector<4x1xf32>
    %120 = math.sqrt %119 : vector<4x1xf32>
    %121 = vector.shape_cast %120 : vector<4x1xf32> to vector<1x4x1xf32>
    %cst_38 = arith.constant dense<0.000000e+00> : vector<1xf32>
    %122 = vector.multi_reduction <add>, %121, %cst_38 [1, 2] : vector<1x4x1xf32> to vector<1xf32>
    %123 = vector.shape_cast %122 : vector<1xf32> to vector<1x1x1xf32>
    %124 = vector.extract %123[0, 0, 0] : f32 from vector<1x1x1xf32>
    %cst_39 = arith.constant 2.500000e-01 : f32
    %125 = arith.mulf %124, %cst_39 : f32
    %c0_40 = arith.constant 0 : index
    %126 = memref.load %arg5[%c0_40] : memref<3xf32, #tpu.memory_space<smem>>
    memref.store %70, %arg5[%c0_40] : memref<3xf32, #tpu.memory_space<smem>>
    %c1_41 = arith.constant 1 : index
    %127 = memref.load %arg5[%c1_41] : memref<3xf32, #tpu.memory_space<smem>>
    memref.store %89, %arg5[%c1_41] : memref<3xf32, #tpu.memory_space<smem>>
    %c2_42 = arith.constant 2 : index
    %128 = memref.load %arg5[%c2_42] : memref<3xf32, #tpu.memory_space<smem>>
    memref.store %125, %arg5[%c2_42] : memref<3xf32, #tpu.memory_space<smem>>
    return
  }
}

</mosaic_0001>

<llo_original>
// kernel: clustering_forward.1
$region0: #{clustering_forward.1}
  #allocation0 [shape = 'u32[]', space=smem, size = 0x4, offset = 0x4, fixed_abs, tag = 'smem constant byte address 0x4 - core index']
  #allocation1 [shape = 'u32[144,128]{1,0:T(1,128)}', space=vmem, size = 0x12000, scoped, tag = 'internal scratch']
  %s0 = inlined_call_operand.vmem [shape: s32[4], index: 0, kind: input, shape index: {}]
  %s1 = inlined_call_operand.vmem [shape: s32[4], index: 1, kind: input, shape index: {}]
  %s2 = inlined_call_operand.hbm [shape: f32[16,32], index: 2, kind: input, shape index: {}]
  %s3 = inlined_call_operand.hbm [shape: f32[16,32], index: 3, kind: input, shape index: {}]
  %s4 = inlined_call_operand.hbm [shape: f32[8,32], index: 4, kind: input, shape index: {}]
  %s5 = inlined_call_operand.vmem [shape: f32[3], index: 5, kind: output, shape index: {}]
  %s6 = sld [smem:[#allocation0]]
  $region50: #{clustering_forward.1} parent=0
    _
  %s8 = ssub.s32 1, %s6
  %s9 = scalar_select 0, %s8, %s6
  $region1: #{clustering_forward.1} parent=0
    #allocation2 [shape = 'u8[512]{0}', space=smem, size = 0x200, scoped, tag = 'input window, operand 0, single buffered']
    #allocation3 [shape = 's32[1]{0}', space=sflag, size = 0x4, scoped, tag = 'scoped memory for clustering_forward.1']
    #allocation4 [shape = 's32[1]{0}', space=sflag, size = 0x4, scoped, tag = 'scoped memory for clustering_forward.1']
    #allocation5 [shape = 's32[1]{0}', space=sflag, size = 0x4, scoped, tag = 'scoped memory for clustering_forward.1']
    #allocation6 [shape = 'u8[512]{0}', space=smem, size = 0x200, scoped, tag = 'input window, operand 1, single buffered']
    #allocation7 [shape = 's32[1]{0}', space=sflag, size = 0x4, scoped, tag = 'scoped memory for clustering_forward.1']
    #allocation8 [shape = 'u8[8192]{0}', space=vmem, size = 0x2000, scoped, tag = 'input window, operand 2, single buffered']
    #allocation9 [shape = 'u8[8192]{0}', space=vmem, size = 0x2000, scoped, tag = 'input window, operand 3, single buffered']
    #allocation10 [shape = 's32[1]{0}', space=sflag, size = 0x4, scoped, tag = 'scoped memory for clustering_forward.1']
    #allocation11 [shape = 'u8[4096]{0}', space=vmem, size = 0x1000, scoped, tag = 'input window, operand 4, single buffered']
    #allocation12 [shape = 'u8[512]{0}', space=smem, size = 0x200, scoped, tag = 'output window, operand 0, single buffered']
    %10 = vsyncpa [#allocation4], 0
    %11 = vsyncpa [#allocation7], 0
    %12 = vsyncpa [#allocation3], 0
    %13 = vsyncpa [#allocation10], 0
    %14 = vsyncpa [#allocation5], 0
    // Predicated region
    $region2: #{clustering_forward.1} parent=1 // pred_check
      _
    $region3: #{clustering_forward.1} parent=1 // pred_check_branch
      %16 = sbr.rel (0) target = $region5
    $region4: #{clustering_forward.1} parent=1 // pred_region
      %s18 = ssub.s32 16, 16
      %19 = vsyncadd [#allocation4], %s18
      %s21 = sshll.u32 %s0, 4
      %s22 = int_to_ptr.vmem [resolvable:$true] %s21
      %24 = dma.vmem_to_smem %s22, 16, [#allocation2], [#allocation4]
    $region5: #{clustering_forward.1} parent=1 // pred_fallthru
      _
    // Predicated region
    $region6: #{clustering_forward.1} parent=1 // pred_check
      _
    $region7: #{clustering_forward.1} parent=1 // pred_check_branch
      %26 = sbr.rel (0) target = $region9
    $region8: #{clustering_forward.1} parent=1 // pred_region
      %s28 = ssub.s32 16, 16
      %29 = vsyncadd [#allocation7], %s28
      %s31 = sshll.u32 %s1, 4
      %s32 = int_to_ptr.vmem [resolvable:$true] %s31
      %34 = dma.vmem_to_smem %s32, 16, [#allocation6], [#allocation7]
    $region9: #{clustering_forward.1} parent=1 // pred_fallthru
      _
    // Predicated region
    $region10: #{clustering_forward.1} parent=1 // pred_check
      _
    $region11: #{clustering_forward.1} parent=1 // pred_check_branch
      %36 = sbr.rel (0) target = $region13
    $region12: #{clustering_forward.1} parent=1 // pred_region
      %s38 = ssub.s32 256, 256
      %39 = vsyncadd [#allocation3], %s38
      %s40 = sshll.u32 [#allocation8], 4
      %s41 = int_to_ptr.vmem [resolvable:$true] %s40
      %46 = dma.hbm_to_vmem [thread:$0]  %s2, 256, %s41, [#allocation3], 128, 128, 8
    $region13: #{clustering_forward.1} parent=1 // pred_fallthru
      _
    // Predicated region
    $region14: #{clustering_forward.1} parent=1 // pred_check
      _
    $region15: #{clustering_forward.1} parent=1 // pred_check_branch
      %48 = sbr.rel (0) target = $region17
    $region16: #{clustering_forward.1} parent=1 // pred_region
      %s50 = ssub.s32 256, 256
      %51 = vsyncadd [#allocation10], %s50
      %s52 = sshll.u32 [#allocation9], 4
      %s53 = int_to_ptr.vmem [resolvable:$true] %s52
      %58 = dma.hbm_to_vmem [thread:$0]  %s3, 256, %s53, [#allocation10], 128, 128, 8
    $region17: #{clustering_forward.1} parent=1 // pred_fallthru
      _
    // Predicated region
    $region18: #{clustering_forward.1} parent=1 // pred_check
      _
    $region19: #{clustering_forward.1} parent=1 // pred_check_branch
      %60 = sbr.rel (0) target = $region21
    $region20: #{clustering_forward.1} parent=1 // pred_region
      %s62 = ssub.s32 128, 128
      %63 = vsyncadd [#allocation10], %s62
      %s65 = sshll.u32 [#allocation11], 4
      %s66 = int_to_ptr.vmem [resolvable:$true] %s65
      %68 = dma.hbm_to_vmem [thread:$0]  %s4, 128, %s66, [#allocation10]
    $region21: #{clustering_forward.1} parent=1 // pred_fallthru
      _
    // Predicated region
    $region22: #{clustering_forward.1} parent=1 // pred_check
      _
    $region23: #{clustering_forward.1} parent=1 // pred_check_branch
      %70 = sbr.rel (0) target = $region25
    $region24: #{clustering_forward.1} parent=1 // pred_region
      %71 = dma.done [#allocation4], 16
    $region25: #{clustering_forward.1} parent=1 // pred_fallthru
      _
    // Predicated region
    $region26: #{clustering_forward.1} parent=1 // pred_check
      _
    $region27: #{clustering_forward.1} parent=1 // pred_check_branch
      %73 = sbr.rel (0) target = $region29
    $region28: #{clustering_forward.1} parent=1 // pred_region
      %74 = dma.done [#allocation7], 16
    $region29: #{clustering_forward.1} parent=1 // pred_fallthru
      _
    // Predicated region
    $region30: #{clustering_forward.1} parent=1 // pred_check
      _
    $region31: #{clustering_forward.1} parent=1 // pred_check_branch
      %76 = sbr.rel (0) target = $region33
    $region32: #{clustering_forward.1} parent=1 // pred_region
      %77 = dma.done [#allocation3], 256
    $region33: #{clustering_forward.1} parent=1 // pred_fallthru
      _
    // Predicated region
    $region34: #{clustering_forward.1} parent=1 // pred_check
      _
    $region35: #{clustering_forward.1} parent=1 // pred_check_branch
      %79 = sbr.rel (0) target = $region37
    $region36: #{clustering_forward.1} parent=1 // pred_region
      %80 = dma.done [#allocation10], 256
    $region37: #{clustering_forward.1} parent=1 // pred_fallthru
      _
    // Predicated region
    $region38: #{clustering_forward.1} parent=1 // pred_check
      _
    $region39: #{clustering_forward.1} parent=1 // pred_check_branch
      %82 = sbr.rel (0) target = $region41
    $region40: #{clustering_forward.1} parent=1 // pred_region
      %83 = dma.done [#allocation10], 128
    $region41: #{clustering_forward.1} parent=1 // pred_fallthru
      _
    %84 = sfence
    %v85 = vld [vmem:[#allocation8] sm:$0xff]
    %v86 = vld [vmem:[#allocation8 + $0x8] sm:$0xff]
    %v87 = vld [vmem:[#allocation9] sm:$0xff]
    %v88 = vld [vmem:[#allocation9 + $0x8] sm:$0xff]
    %v89 = vld [vmem:[#allocation11] sm:$0xff]
    %v90 = vmul.f32 %v85, %v85
    %v91 = vmul.f32 %v86, %v86
    %v92 = vmul.f32 %v87, %v87
    %v93 = vmul.f32 %v88, %v88
    %v94 = vmul.f32 %v89, %v89
    %vm95 = vcmask 261120
    %v96 = vsel %vm95, %v90, 0.0
    %97 = vadd.xlane.f32.xlu0 %v96
    %v98 = vpop.xlane.xlu0 %97
    %v99 = vsel %vm95, %v91, 0.0
    %100 = vadd.xlane.f32.xlu0 %v99
    %v101 = vpop.xlane.xlu0 %100
    %v102 = vsel %vm95, %v92, 0.0
    %103 = vadd.xlane.f32.xlu0 %v102
    %v104 = vpop.xlane.xlu0 %103
    %v105 = vsel %vm95, %v93, 0.0
    %106 = vadd.xlane.f32.xlu0 %v105
    %v107 = vpop.xlane.xlu0 %106
    %v108 = vsel %vm95, %v94, 0.0
    %109 = vadd.xlane.f32.xlu0 %v108
    %v110 = vpop.xlane.xlu0 %109
    %v112 = vsel %vm95, %v85, 0
    %v115 = vsel %vm95, %v86, 0
    %v118 = vsel %vm95, %v87, 0
    %v121 = vsel %vm95, %v88, 0
    %v124 = vsel %vm95, %v89, 0
    %126 = vmatprep.subr.mxu0 0.0
    %127 = vmatpush1.xpose.msra.mxu0 %v124
    %128 = vmatprep.subr.mxu0 0.0
    %129 = vmatpush1.xpose.msra.mxu0 0.0
    %130 = vmatprep.subr.mxu0 0.0
    %131 = vmatpush1.xpose.msra.mxu0 0.0
    %132 = vmatprep.subr.mxu0 0.0
    %133 = vmatpush1.xpose.msra.mxu0 0.0
    %134 = vmatprep.subr.mxu0 0.0
    %135 = vmatpush1.xpose.msra.mxu0 0.0
    %136 = vmatprep.subr.mxu0 0.0
    %137 = vmatpush1.xpose.msra.mxu0 0.0
    %138 = vmatprep.subr.mxu0 0.0
    %139 = vmatpush1.xpose.msra.mxu0 0.0
    %140 = vmatprep.subr.mxu0 0.0
    %141 = vmatpush1.xpose.msra.mxu0 0.0
    %142 = vmatprep.subr.mxu0 0.0
    %143 = vmatpush1.xpose.msra.mxu0 0.0
    %144 = vmatprep.subr.mxu0 0.0
    %145 = vmatpush1.xpose.msra.mxu0 0.0
    %146 = vmatprep.subr.mxu0 0.0
    %147 = vmatpush1.xpose.msra.mxu0 0.0
    %148 = vmatprep.subr.mxu0 0.0
    %149 = vmatpush1.xpose.msra.mxu0 0.0
    %150 = vmatprep.subr.mxu0 0.0
    %151 = vmatpush1.xpose.msra.mxu0 0.0
    %152 = vmatprep.subr.mxu0 0.0
    %153 = vmatpush1.xpose.msra.mxu0 0.0
    %154 = vmatprep.subr.mxu0 0.0
    %155 = vmatpush1.xpose.msra.mxu0 0.0
    %156 = vmatprep.subr.mxu0 0.0
    %157 = vmatpush1.xpose.msra.mxu0 0.0
    %158 = vmatprep.subr.mxu0 0.0
    %159 = vmatpush1.xpose.msra.mxu0 0.0
    %160 = vmatprep.subr.mxu0 0.0
    %161 = vmatpush1.xpose.msra.mxu0 0.0
    %162 = vmatprep.subr.mxu0 0.0
    %163 = vmatpush1.xpose.msra.mxu0 0.0
    %164 = vmatprep.subr.mxu0 0.0
    %165 = vmatpush1.xpose.msra.mxu0 0.0
    %166 = vmatprep.subr.mxu0 0.0
    %167 = vmatpush1.xpose.msra.mxu0 0.0
    %168 = vmatprep.subr.mxu0 0.0
    %169 = vmatpush1.xpose.msra.mxu0 0.0
    %170 = vmatprep.subr.mxu0 0.0
    %171 = vmatpush1.xpose.msra.mxu0 0.0
    %172 = vmatprep.subr.mxu0 0.0
    %173 = vmatpush1.xpose.msra.mxu0 0.0
    %174 = vmatprep.subr.mxu0 0.0
    %175 = vmatpush1.xpose.msra.mxu0 0.0
    %176 = vmatprep.subr.mxu0 0.0
    %177 = vmatpush1.xpose.msra.mxu0 0.0
    %178 = vmatprep.subr.mxu0 0.0
    %179 = vmatpush1.xpose.msra.mxu0 0.0
    %180 = vmatprep.subr.mxu0 0.0
    %181 = vmatpush1.xpose.msra.mxu0 0.0
    %182 = vmatprep.subr.mxu0 0.0
    %183 = vmatpush1.xpose.msra.mxu0 0.0
    %184 = vmatprep.subr.mxu0 0.0
    %185 = vmatpush1.xpose.msra.mxu0 0.0
    %186 = vmatprep.subr.mxu0 0.0
    %187 = vmatpush1.xpose.msra.mxu0 0.0
    %188 = vmatprep.subr.mxu0 0.0
    %189 = vmatpush1.xpose.msra.mxu0 0.0
    %190 = vmatprep.mubr.f32.mxu0 0.0
    %191 = vmatmul.mubr.f32.gmra.mrb[0].mxu0 %v112
    %v192 = vpop.f32.mrb[0].mxu0
    %v193 = vadd.f32 0.0, %v192
    %v194 = vpop.f32.mrb[0].mxu0
    %195 = vmatprep.mubr.f32.mxu0 0.0
    %196 = vmatmul.mubr.f32.gmra.mrb[0].mxu0 %v115
    %v197 = vpop.f32.mrb[0].mxu0
    %v198 = vadd.f32 0.0, %v197
    %v199 = vpop.f32.mrb[0].mxu0
    %200 = vmatprep.mubr.f32.mxu0 0.0
    %201 = vmatmul.mubr.f32.gmra.mrb[0].mxu0 %v118
    %v202 = vpop.f32.mrb[0].mxu0
    %v203 = vadd.f32 0.0, %v202
    %v204 = vpop.f32.mrb[0].mxu0
    %205 = vmatprep.mubr.f32.mxu0 0.0
    %206 = vmatmul.mubr.f32.gmra.mrb[0].mxu0 %v121
    %v207 = vpop.f32.mrb[0].mxu0
    %v208 = vadd.f32 0.0, %v207
    %v209 = vpop.f32.mrb[0].mxu0
    %210 = vmatprep.mubr.f32.mxu0 0.0
    %211 = vmatmul.mubr.f32.gmra.mrb[0].mxu0 %v124
    %v212 = vpop.f32.mrb[0].mxu0
    %v213 = vadd.f32 0.0, %v212
    %v214 = vpop.f32.mrb[0].mxu0
    %215 = vdwg.mxu0
    %216 = vxpose.xlu0.b32.start [1/16] %v110, 128
    %217 = vxpose.xlu0.b32.cont [2/16] 0.0, 128
    %218 = vxpose.xlu0.b32.cont [3/16] 0.0, 128
    %219 = vxpose.xlu0.b32.cont [4/16] 0.0, 128
    %220 = vxpose.xlu0.b32.cont [5/16] 0.0, 128
    %221 = vxpose.xlu0.b32.cont [6/16] 0.0, 128
    %222 = vxpose.xlu0.b32.cont [7/16] 0.0, 128
    %223 = vxpose.xlu0.b32.cont [8/16] 0.0, 128
    %224 = vxpose.xlu0.b32.cont [9/16] 0.0, 128
    %225 = vxpose.xlu0.b32.cont [10/16] 0.0, 128
    %226 = vxpose.xlu0.b32.cont [11/16] 0.0, 128
    %227 = vxpose.xlu0.b32.cont [12/16] 0.0, 128
    %228 = vxpose.xlu0.b32.cont [13/16] 0.0, 128
    %229 = vxpose.xlu0.b32.cont [14/16] 0.0, 128
    %230 = vxpose.xlu0.b32.cont [15/16] 0.0, 128
    %231 = vxpose.xlu0.b32.end [16/16] 0.0, 128
    %v232 = vpop.trf.xlu0
    %v233 = vpop.trf.xlu0
    %v234 = vpop.trf.xlu0
    %v235 = vpop.trf.xlu0
    %v236 = vpop.trf.xlu0
    %v237 = vpop.trf.xlu0
    %v238 = vpop.trf.xlu0
    %v239 = vpop.trf.xlu0
    %v240 = vpop.trf.xlu0
    %v241 = vpop.trf.xlu0
    %v242 = vpop.trf.xlu0
    %v243 = vpop.trf.xlu0
    %v244 = vpop.trf.xlu0
    %v245 = vpop.trf.xlu0
    %v246 = vpop.trf.xlu0
    %v247 = vpop.trf.xlu0
    %v248 = vlaneseq
    %v249 = vshrl.u32 %v248, 7
    %v250 = vsub.s32 0, %v249
    %v251 = vrot.slane %v232, %v250
    %v252 = vadd.f32 %v98, %v251
    %v253 = vadd.f32 %v101, %v251
    %v254 = vadd.f32 %v104, %v251
    %v255 = vadd.f32 %v107, %v251
    %v256 = vadd.f32 %v110, %v251
    %v257 = vmul.f32 %v193, 2.0
    %v258 = vmul.f32 %v198, 2.0
    %v259 = vmul.f32 %v203, 2.0
    %v260 = vmul.f32 %v208, 2.0
    %v261 = vmul.f32 %v213, 2.0
    %v262 = vsub.f32 %v252, %v257
    %v263 = vsub.f32 %v253, %v258
    %v264 = vsub.f32 %v254, %v259
    %v265 = vsub.f32 %v255, %v260
    %v266 = vsub.f32 %v256, %v261
    %v267 = vmax.f32 %v262, 0.0
    %v268 = vmax.f32 %v263, 0.0
    %v269 = vmax.f32 %v264, 0.0
    %v270 = vmax.f32 %v265, 0.0
    %v271 = vmax.f32 %v266, 0.0
    %v272 = vrsqrt.pop %v267
    %v273 = vmul.f32 %v267, %v272
    %vm274 = vcmp.eq.f32.partialorder %v267, inf
    %v275 = vsel %vm274, %v267, %v273
    %vm276 = vcmp.eq.f32.partialorder %v267, 0.0
    %v277 = vand.u32 %v267, 2147483648
    %v278 = vsel %vm276, %v277, %v275
    %v279 = vrsqrt.pop %v268
    %v280 = vmul.f32 %v268, %v279
    %vm281 = vcmp.eq.f32.partialorder %v268, inf
    %v282 = vsel %vm281, %v268, %v280
    %vm283 = vcmp.eq.f32.partialorder %v268, 0.0
    %v284 = vand.u32 %v268, 2147483648
    %v285 = vsel %vm283, %v284, %v282
    %v286 = vrsqrt.pop %v269
    %v287 = vmul.f32 %v269, %v286
    %vm288 = vcmp.eq.f32.partialorder %v269, inf
    %v289 = vsel %vm288, %v269, %v287
    %vm290 = vcmp.eq.f32.partialorder %v269, 0.0
    %v291 = vand.u32 %v269, 2147483648
    %v292 = vsel %vm290, %v291, %v289
    %v293 = vrsqrt.pop %v270
    %v294 = vmul.f32 %v270, %v293
    %vm295 = vcmp.eq.f32.partialorder %v270, inf
    %v296 = vsel %vm295, %v270, %v294
    %vm297 = vcmp.eq.f32.partialorder %v270, 0.0
    %v298 = vand.u32 %v270, 2147483648
    %v299 = vsel %vm297, %v298, %v296
    %vm300 = vcmask 64512
    %v301 = vsel %vm300, %v278, 0.0
    %v302 = vsel %vm300, %v285, 0.0
    %v303 = vadd.f32 %v301, %v302
    %v304 = vrot.slane %v303, 4
    %v305 = vadd.f32 %v303, %v304
    %v306 = vrot.slane %v305, 2
    %v307 = vadd.f32 %v305, %v306
    %v308 = vrot.slane %v307, 1
    %v309 = vadd.f32 %v307, %v308
    %v310 = vsel %vm300, %v292, 0.0
    %v311 = vsel %vm300, %v299, 0.0
    %v312 = vadd.f32 %v310, %v311
    %v313 = vrot.slane %v312, 4
    %v314 = vadd.f32 %v312, %v313
    %v315 = vrot.slane %v314, 2
    %v316 = vadd.f32 %v314, %v315
    %v317 = vrot.slane %v316, 1
    %v318 = vadd.f32 %v316, %v317
    %v319 = vsel %vm300, %v309, inf
    %320 = vmin.xlane.f32.xlu0 %v319
    %v321 = vpop.xlane.xlu0 %320
    %s322 = vtos %v321
    %v323 = vstv %s322
    %v324 = vsel %vm300, %v309, -inf
    %325 = vmax.xlane.f32.xlu0 %v324
    %v326 = vpop.xlane.xlu0 %325
    %s327 = vtos %v326
    %v328 = vstv %s327
    %v329 = vsel %vm300, %v318, inf
    %330 = vmin.xlane.f32.xlu0 %v329
    %v331 = vpop.xlane.xlu0 %330
    %s332 = vtos %v331
    %v333 = vstv %s332
    %v334 = vsel %vm300, %v318, -inf
    %335 = vmax.xlane.f32.xlu0 %v334
    %v336 = vpop.xlane.xlu0 %335
    %s337 = vtos %v336
    %v338 = vstv %s337
    %v339 = vsub.f32 %v328, %v323
    %v340 = vadd.f32 %v339, 1e-05
    %v341 = vrcp.pop %v340
    %v342 = vsub.f32 %v338, %v333
    %v343 = vadd.f32 %v342, 1e-05
    %v344 = vrcp.pop %v343
    %v345 = vsub.f32 %v309, %v323
    %v346 = vmul.f32 %v345, %v341
    %v347 = vsub.f32 %v318, %v333
    %v348 = vmul.f32 %v347, %v344
    %v349 = vsub.f32 %v346, %v348
    %v350 = vmul.f32 %v349, %v349
    %vm351 = vcmask 57344
    %v352 = vsel %vm351, %v350, 0.0
    %353 = vadd.xlane.f32.xlu0 %v352
    %v354 = vpop.xlane.xlu0 %353
    %v355 = vrot.slane %v354, 4
    %v356 = vadd.f32 %v354, %v355
    %v357 = vrot.slane %v356, 2
    %v358 = vadd.f32 %v356, %v357
    %v359 = vrot.slane %v358, 1
    %v360 = vadd.f32 %v358, %v359
    %s361 = vtos %v360
    %v362 = vstv %s361
    %v363 = vrsqrt.pop %v362
    %v364 = vmul.f32 %v362, %v363
    %vm365 = vcmp.eq.f32.partialorder %v362, inf
    %v366 = vsel %vm365, %v362, %v364
    %vm367 = vcmp.eq.f32.partialorder %v362, 0.0
    %v368 = vand.u32 %v362, 2147483648
    %v369 = vsel %vm367, %v368, %v366
    %s370 = vtos %v369
    %v371 = vlaneseq
    %v372 = vshrl.u32 %v371, 7
    %v373 = vlaneseq
    %v374 = vand.u32 %v373, 127
    %vm375 = vcmp.eq.s32.totalorder %v372, %v374
    %v376 = vsel %vm375, 0.0, %v271
    %v377 = vsel %vm300, %v376, 0.0
    %378 = vadd.xlane.f32.xlu0 %v377
    %v379 = vpop.xlane.xlu0 %378
    %v380 = vrot.slane %v379, 4
    %v381 = vadd.f32 %v379, %v380
    %v382 = vrot.slane %v381, 2
    %v383 = vadd.f32 %v381, %v382
    %v384 = vrot.slane %v383, 1
    %v385 = vadd.f32 %v383, %v384
    %s386 = vtos %v385
    %s387 = smul.f32 %s386, 0.017857144
    %v388 = vsel %vm300, %v267, inf
    %389 = vmin.xlane.f32.xlu0 %v388
    %v390 = vpop.xlane.xlu0 %389
    %v391 = vsel %vm300, %v268, inf
    %392 = vmin.xlane.f32.xlu0 %v391
    %v393 = vpop.xlane.xlu0 %392
    %v394 = vsel %vm300, %v269, inf
    %395 = vmin.xlane.f32.xlu0 %v394
    %v396 = vpop.xlane.xlu0 %395
    %v397 = vsel %vm300, %v270, inf
    %398 = vmin.xlane.f32.xlu0 %v397
    %v399 = vpop.xlane.xlu0 %398
    %vm400 = vcmask 7168
    %v401 = vsel %vm400, %v390, 0.0
    %v402 = vsel %vm400, %v393, 0.0
    %v403 = vadd.f32 %v401, %v402
    %v404 = vsel %vm400, %v396, 0.0
    %v405 = vadd.f32 %v403, %v404
    %v406 = vsel %vm400, %v399, 0.0
    %v407 = vadd.f32 %v405, %v406
    %408 = vadd.xlane.f32.xlu0 %v407
    %v409 = vpop.xlane.xlu0 %408
    %v410 = vrot.slane %v409, 4
    %v411 = vadd.f32 %v409, %v410
    %v412 = vrot.slane %v411, 2
    %v413 = vadd.f32 %v411, %v412
    %v414 = vrot.slane %v413, 1
    %v415 = vadd.f32 %v413, %v414
    %s416 = vtos %v415
    %s417 = smul.f32 %s416, 0.03125
    %s418 = smul.f32 %s417, 0.125
    %s419 = sadd.f32 %s387, %s418
    %s420 = sld [smem:[#allocation2]]
    %s421 = scalar_lea.vmem [#allocation8], %s420
    %v422 = vld [vmem:[%s421] sm:$0x1]
    %s423 = sld [smem:[#allocation2 + $0x1]]
    %s424 = scalar_lea.vmem [#allocation8], %s423
    %v425 = vld [vmem:[%s424] sm:$0x1]
    %s426 = sld [smem:[#allocation2 + $0x2]]
    %s427 = scalar_lea.vmem [#allocation8], %s426
    %v428 = vld [vmem:[%s427] sm:$0x1]
    %s429 = sld [smem:[#allocation2 + $0x3]]
    %s430 = scalar_lea.vmem [#allocation8], %s429
    %v431 = vld [vmem:[%s430] sm:$0x1]
    %s432 = sld [smem:[#allocation6]]
    %s433 = scalar_lea.vmem [#allocation9], %s432
    %v434 = vld [vmem:[%s433] sm:$0x1]
    %s435 = sld [smem:[#allocation6 + $0x1]]
    %s436 = scalar_lea.vmem [#allocation9], %s435
    %v437 = vld [vmem:[%s436] sm:$0x1]
    %s438 = sld [smem:[#allocation6 + $0x2]]
    %s439 = scalar_lea.vmem [#allocation9], %s438
    %v440 = vld [vmem:[%s439] sm:$0x1]
    %s441 = sld [smem:[#allocation6 + $0x3]]
    %s442 = scalar_lea.vmem [#allocation9], %s441
    %v443 = vld [vmem:[%s442] sm:$0x1]
    %v445 = vrot.slane %v425, 7
    %v448 = vrot.slane %v428, 6
    %v451 = vrot.slane %v431, 5
    %vm453 = vcmask 1040384
    %v454 = vsel %vm453, %v422, %v445
    %vm455 = vcmask 1041408
    %v456 = vsel %vm455, %v454, %v448
    %vm457 = vcmask 1042432
    %v458 = vsel %vm457, %v456, %v451
    %v460 = vrot.slane %v437, 7
    %v463 = vrot.slane %v440, 6
    %v466 = vrot.slane %v443, 5
    %v468 = vsel %vm453, %v434, %v460
    %v469 = vsel %vm455, %v468, %v463
    %v470 = vsel %vm457, %v469, %v466
    %v471 = vsub.f32 %v458, %v470
    %v472 = vmul.f32 %v471, %v471
    %vm473 = vcmask 257024
    %v474 = vsel %vm473, %v472, 0.0
    %475 = vadd.xlane.f32.xlu0 %v474
    %v476 = vpop.xlane.xlu0 %475
    %v477 = vrsqrt.pop %v476
    %v478 = vmul.f32 %v476, %v477
    %vm479 = vcmp.eq.f32.partialorder %v476, inf
    %v480 = vsel %vm479, %v476, %v478
    %vm481 = vcmp.eq.f32.partialorder %v476, 0.0
    %v482 = vand.u32 %v476, 2147483648
    %v483 = vsel %vm481, %v482, %v480
    %vm484 = vcmask 3072
    %v485 = vsel %vm484, %v483, 0.0
    %486 = vadd.xlane.f32.xlu0 %v485
    %v487 = vpop.xlane.xlu0 %486
    %v488 = vrot.slane %v487, 4
    %v489 = vadd.f32 %v487, %v488
    %v490 = vrot.slane %v489, 2
    %v491 = vadd.f32 %v489, %v490
    %v492 = vrot.slane %v491, 1
    %v493 = vadd.f32 %v491, %v492
    %s494 = vtos %v493
    %s495 = smul.f32 %s494, 0.25
    %s496 = scalar_lea.smem [#allocation12], 0
    %497 = sst [smem:[%s496]] %s370
    %s498 = scalar_lea.smem [#allocation12], 1
    %499 = sst [smem:[%s498]] %s419
    %s500 = scalar_lea.smem [#allocation12], 2
    %501 = sst [smem:[%s500]] %s495
    // Predicated region
    $region42: #{clustering_forward.1} parent=1 // pred_check
      _
    $region43: #{clustering_forward.1} parent=1 // pred_check_branch
      %503 = sbr.rel (0) target = $region45
    $region44: #{clustering_forward.1} parent=1 // pred_region
      %s505 = ssub.s32 16, 16
      %506 = vsyncadd [#allocation5], %s505
      %s508 = sshll.u32 %s5, 4
      %s509 = int_to_ptr.vmem [resolvable:$true] %s508
      %511 = dma.smem_to_vmem [#allocation12], 16, %s509, [#allocation5]
    $region45: #{clustering_forward.1} parent=1 // pred_fallthru
      _
    // Predicated region
    $region46: #{clustering_forward.1} parent=1 // pred_check
      _
    $region47: #{clustering_forward.1} parent=1 // pred_check_branch
      %513 = sbr.rel (0) target = $region49
    $region48: #{clustering_forward.1} parent=1 // pred_region
      %514 = dma.done [#allocation5], 16
    $region49: #{clustering_forward.1} parent=1 // pred_fallthru
      _
    %515 = sfence
    %516 = vsyncpa [#allocation3], 1
    %517 = vsyncpa [#allocation10], 1
    %518 = vsyncpa [#allocation4], 1
    %519 = vsyncpa [#allocation7], 1
    %520 = vsyncpa [#allocation5], 1

</llo_original>
